<compile_context>
chip_gen: v7x
topology: tpu7x:2x2x1
jax: 0.10.0
libtpu: 0.0.40
codegen_flags: <defaults>
</compile_context>

<pallas_src>
import jax
import jax.numpy as jnp
from jax.experimental import pallas as pl
from jax.experimental.pallas import tpu as pltpu


def _cdiv(a, b):
    return (a + b - 1) // b


def _round_up(x, m):
    return ((x + m - 1) // m) * m


def _denoiser_kernel(constel_ref, z_ref, scale_ref, out_ref):
    # constel_ref: (M,) f32 scalar-prefetch operand (SMEM), read as scalars.
    # z_ref / scale_ref / out_ref: (TR, L) f32 lane-dense tiles.
    # scale == -1/(2*tau2), precomputed in the wrapper (strictly negative).
    z = z_ref[...]
    scale = scale_ref[...]
    M = constel_ref.shape[0]

    # Pass 1: running min of squared distances (softmax stabiliser).
    # scale < 0  =>  max_m arg_m == scale * min_m d2_m, so no cross-lane
    # reduce and no exps.  Only d2_min stays live; d2_m is recomputed in
    # pass 2 (2 VPU ops per point, cheaper than M live tile temporaries).
    d = z - constel_ref[0]
    d2_min = d * d
    for m in range(1, M):
        d = z - constel_ref[m]
        d2_min = jnp.minimum(d2_min, d * d)

    # Pass 2: fused stabilised softmax + expectation.
    #   e_m = exp(scale * (d2_m - d2_min));  out = (sum_m e_m c_m) / (sum_m e_m)
    d = z - constel_ref[0]
    e = jnp.exp((d * d - d2_min) * scale)
    den = e
    num = e * constel_ref[0]
    for m in range(1, M):
        d = z - constel_ref[m]
        e = jnp.exp((d * d - d2_min) * scale)
        den = den + e
        num = num + e * constel_ref[m]

    # den >= 1 (the max term contributes exp(0) = 1): EUP approximate
    # reciprocal + one Newton step is safe and stays within 1e-5 of exact.
    r = pl.reciprocal(den, approx=True)
    r = r * (2.0 - den * r)
    out_ref[...] = num * r


def gaussian_denoiser(zt, tau2_t, constellation, NT, *,
                      lane_width=512, tile_rows=1024):
    """zt: (B, NT) f32; tau2_t: (B, 1, 1) f32; constellation: (M,) f32."""
    B = zt.shape[0]
    M = int(constellation.shape[0])
    R = B * NT

    # ---- lane-dense slab layout: flat problem rows on the lane axis --------
    max_l = 128 * max(1, min(lane_width // 128, _cdiv(R, 128)))
    L = max_l
    for cand in range(max_l, 0, -128):       # prefer an L that divides R
        if R % cand == 0:
            L = cand
            break
    S = _cdiv(R, L)                           # sublane rows needed

    TR = max(8, min(_round_up(tile_rows, 8), _round_up(S, 8)))
    max_tr = max(8, ((4 * 1024 * 1024) // (4 * L)) // 8 * 8)  # <=4 MiB per tile
    TR = min(TR, max_tr)
    num_tiles = _cdiv(S, TR)
    # Keep both v7x TensorCores busy when there is enough work (only when the
    # split stays exact so it never introduces padding copies).
    if num_tiles == 1 and S >= 16 and S % 16 == 0:
        TR = S // 2
        num_tiles = 2

    S_pad = num_tiles * TR
    R_pad = S_pad * L
    pad = R_pad - R

    z_flat = zt.reshape(R).astype(jnp.float32)
    # Precomputed per-row scale: only B distinct divides, broadcast by XLA.
    scale_rows = jnp.broadcast_to(
        -0.5 / tau2_t.reshape(B, 1).astype(jnp.float32), (B, NT)).reshape(R)

    if pad == 0:
        z_slab = z_flat.reshape(S_pad, L)         # free bitcast, no copy
        scale_slab = scale_rows.reshape(S_pad, L)
    else:
        z_slab = jnp.pad(z_flat, (0, pad)).reshape(S_pad, L)
        # pad scale with a finite negative value so padded rows stay finite
        scale_slab = jnp.pad(scale_rows, (0, pad),
                             constant_values=-0.5).reshape(S_pad, L)

    c_arr = constellation.reshape(M).astype(jnp.float32)

    tile_bytes = TR * L * 4
    # 3 arrays x 2 pipeline buffers + kernel intermediates; raise v5e's 16 MiB
    # default, stay well under v7x's 64 MiB per-TC VMEM.
    vmem_limit = int(min(56 * 1024 * 1024,
                         max(32 * 1024 * 1024, 24 * tile_bytes)))

    out_slab = pl.pallas_call(
        _denoiser_kernel,
        out_shape=jax.ShapeDtypeStruct((S_pad, L), jnp.float32),
        grid_spec=pltpu.PrefetchScalarGridSpec(
            num_scalar_prefetch=1,                       # constellation -> SMEM
            grid=(num_tiles,),
            in_specs=[
                pl.BlockSpec((TR, L), lambda i, c: (i, 0)),   # z slab
                pl.BlockSpec((TR, L), lambda i, c: (i, 0)),   # scale slab
            ],
            out_specs=pl.BlockSpec((TR, L), lambda i, c: (i, 0)),
        ),
        compiler_params=pltpu.CompilerParams(
            dimension_semantics=("parallel",),
            vmem_limit_bytes=vmem_limit),
    )(c_arr, z_slab, scale_slab)

    if pad == 0:
        shatt1 = out_slab.reshape(B, NT)          # free bitcast
    else:
        shatt1 = out_slab.reshape(R_pad)[:R].reshape(B, NT)

    denoiser_helper = {}
    # TODO(synk): if this runs inside the MMNet iteration loop, fuse it into the
    # surrounding kernel / matmul epilogue to avoid a standalone HBM round-trip.
    return shatt1, denoiser_helper


def _reference(zt, tau2_t, constellation, NT):
    """Plain-JAX mirror of the PyTorch forward for verification."""
    M = constellation.shape[0]
    arg = zt.reshape(-1, 1) - constellation               # (B*NT, M)
    arg = arg.reshape(-1, NT, M)
    arg = -1.0 * jnp.square(arg) / (2.0 * tau2_t)         # tau2_t: (B,1,1)
    arg = arg.reshape(-1, M)
    p = jax.nn.softmax(arg, axis=1)
    shat = p @ constellation.reshape(M, 1)
    return shat.reshape(-1, NT)


if __name__ == "__main__":
    key = jax.random.PRNGKey(0)
    k1, k2 = jax.random.split(key)

    # Module params: NT = 2 * params['NT'], M = |constellation|
    NT_half = 4
    NT = 2 * NT_half          # real-valued decomposition: 8
    B = 2
    # 4-PAM real constellation (unit average power), deterministic
    constellation = jnp.array([-3.0, -1.0, 1.0, 3.0],
                              dtype=jnp.float32) / jnp.sqrt(5.0)

    zt = jax.random.normal(k1, (B, NT), dtype=jnp.float32)
    tau2_t = 0.1 + jax.random.uniform(k2, (B, 1, 1), dtype=jnp.float32)

    shatt1, helper = gaussian_denoiser(zt, tau2_t, constellation, NT)
    shatt1 = jax.block_until_ready(shatt1)

    ref = _reference(zt, tau2_t, constellation, NT)
    assert shatt1.shape == (B, NT)
    assert jnp.allclose(shatt1, ref, atol=1e-5, rtol=1e-5), (shatt1, ref)

    print("KERNEL_OK")
</pallas_src>

<mosaic_0001>
module attributes {stable_mosaic.version = 11 : i64} {
  func.func @_denoiser_kernel(%arg0: i32, %arg1: memref<4xf32, #tpu.memory_space<smem>>, %arg2: memref<8x128xf32, #tpu.memory_space<vmem>>, %arg3: memref<8x128xf32, #tpu.memory_space<vmem>>, %arg4: memref<8x128xf32, #tpu.memory_space<vmem>>) attributes {dimension_semantics = [#tpu.dimension_semantics<parallel>], iteration_bounds = array<i64: 1>, scalar_prefetch = 1 : i64, scratch_operands = 0 : i64, tpu.core_type = #tpu.core_type<tc>, window_params = [{transform_indices = @transform_0, window_bounds = array<i64: 8, 128>}, {transform_indices = @transform_1, window_bounds = array<i64: 8, 128>}, {transform_indices = @transform_2, window_bounds = array<i64: 8, 128>}]} {
    %c0 = arith.constant 0 : index
    %c0_0 = arith.constant 0 : index
    %0 = vector.load %arg2[%c0, %c0_0] : memref<8x128xf32, #tpu.memory_space<vmem>>, vector<8x128xf32>
    %c0_1 = arith.constant 0 : index
    %c0_2 = arith.constant 0 : index
    %1 = vector.load %arg3[%c0_1, %c0_2] : memref<8x128xf32, #tpu.memory_space<vmem>>, vector<8x128xf32>
    %c0_3 = arith.constant 0 : index
    %2 = memref.load %arg1[%c0_3] : memref<4xf32, #tpu.memory_space<smem>>
    %3 = vector.broadcast %2 : f32 to vector<8x128xf32>
    %4 = arith.subf %0, %3 : vector<8x128xf32>
    %5 = arith.mulf %4, %4 : vector<8x128xf32>
    %c1 = arith.constant 1 : index
    %6 = memref.load %arg1[%c1] : memref<4xf32, #tpu.memory_space<smem>>
    %7 = vector.broadcast %6 : f32 to vector<8x128xf32>
    %8 = arith.subf %0, %7 : vector<8x128xf32>
    %9 = arith.mulf %8, %8 : vector<8x128xf32>
    %10 = arith.minimumf %5, %9 : vector<8x128xf32>
    %c2 = arith.constant 2 : index
    %11 = memref.load %arg1[%c2] : memref<4xf32, #tpu.memory_space<smem>>
    %12 = vector.broadcast %11 : f32 to vector<8x128xf32>
    %13 = arith.subf %0, %12 : vector<8x128xf32>
    %14 = arith.mulf %13, %13 : vector<8x128xf32>
    %15 = arith.minimumf %10, %14 : vector<8x128xf32>
    %c3 = arith.constant 3 : index
    %16 = memref.load %arg1[%c3] : memref<4xf32, #tpu.memory_space<smem>>
    %17 = vector.broadcast %16 : f32 to vector<8x128xf32>
    %18 = arith.subf %0, %17 : vector<8x128xf32>
    %19 = arith.mulf %18, %18 : vector<8x128xf32>
    %20 = arith.minimumf %15, %19 : vector<8x128xf32>
    %c0_4 = arith.constant 0 : index
    %21 = memref.load %arg1[%c0_4] : memref<4xf32, #tpu.memory_space<smem>>
    %22 = vector.broadcast %21 : f32 to vector<8x128xf32>
    %23 = arith.subf %0, %22 : vector<8x128xf32>
    %24 = arith.mulf %23, %23 : vector<8x128xf32>
    %25 = arith.subf %24, %20 : vector<8x128xf32>
    %26 = arith.mulf %25, %1 : vector<8x128xf32>
    %27 = math.exp %26 : vector<8x128xf32>
    %c0_5 = arith.constant 0 : index
    %28 = memref.load %arg1[%c0_5] : memref<4xf32, #tpu.memory_space<smem>>
    %29 = vector.broadcast %28 : f32 to vector<8x128xf32>
    %30 = arith.mulf %27, %29 : vector<8x128xf32>
    %c1_6 = arith.constant 1 : index
    %31 = memref.load %arg1[%c1_6] : memref<4xf32, #tpu.memory_space<smem>>
    %32 = vector.broadcast %31 : f32 to vector<8x128xf32>
    %33 = arith.subf %0, %32 : vector<8x128xf32>
    %34 = arith.mulf %33, %33 : vector<8x128xf32>
    %35 = arith.subf %34, %20 : vector<8x128xf32>
    %36 = arith.mulf %35, %1 : vector<8x128xf32>
    %37 = math.exp %36 : vector<8x128xf32>
    %38 = arith.addf %27, %37 : vector<8x128xf32>
    %c1_7 = arith.constant 1 : index
    %39 = memref.load %arg1[%c1_7] : memref<4xf32, #tpu.memory_space<smem>>
    %40 = vector.broadcast %39 : f32 to vector<8x128xf32>
    %41 = arith.mulf %37, %40 : vector<8x128xf32>
    %42 = arith.addf %30, %41 : vector<8x128xf32>
    %c2_8 = arith.constant 2 : index
    %43 = memref.load %arg1[%c2_8] : memref<4xf32, #tpu.memory_space<smem>>
    %44 = vector.broadcast %43 : f32 to vector<8x128xf32>
    %45 = arith.subf %0, %44 : vector<8x128xf32>
    %46 = arith.mulf %45, %45 : vector<8x128xf32>
    %47 = arith.subf %46, %20 : vector<8x128xf32>
    %48 = arith.mulf %47, %1 : vector<8x128xf32>
    %49 = math.exp %48 : vector<8x128xf32>
    %50 = arith.addf %38, %49 : vector<8x128xf32>
    %c2_9 = arith.constant 2 : index
    %51 = memref.load %arg1[%c2_9] : memref<4xf32, #tpu.memory_space<smem>>
    %52 = vector.broadcast %51 : f32 to vector<8x128xf32>
    %53 = arith.mulf %49, %52 : vector<8x128xf32>
    %54 = arith.addf %42, %53 : vector<8x128xf32>
    %c3_10 = arith.constant 3 : index
    %55 = memref.load %arg1[%c3_10] : memref<4xf32, #tpu.memory_space<smem>>
    %56 = vector.broadcast %55 : f32 to vector<8x128xf32>
    %57 = arith.subf %0, %56 : vector<8x128xf32>
    %58 = arith.mulf %57, %57 : vector<8x128xf32>
    %59 = arith.subf %58, %20 : vector<8x128xf32>
    %60 = arith.mulf %59, %1 : vector<8x128xf32>
    %61 = math.exp %60 : vector<8x128xf32>
    %62 = arith.addf %50, %61 : vector<8x128xf32>
    %c3_11 = arith.constant 3 : index
    %63 = memref.load %arg1[%c3_11] : memref<4xf32, #tpu.memory_space<smem>>
    %64 = vector.broadcast %63 : f32 to vector<8x128xf32>
    %65 = arith.mulf %61, %64 : vector<8x128xf32>
    %66 = arith.addf %54, %65 : vector<8x128xf32>
    %67 = tpu.reciprocal %62 {approx = true} : vector<8x128xf32> -> vector<8x128xf32>
    %68 = arith.mulf %62, %67 : vector<8x128xf32>
    %cst = arith.constant 2.000000e+00 : f32
    %69 = vector.broadcast %cst : f32 to vector<8x128xf32>
    %70 = arith.subf %69, %68 : vector<8x128xf32>
    %71 = arith.mulf %67, %70 : vector<8x128xf32>
    %72 = arith.mulf %66, %71 : vector<8x128xf32>
    %c0_12 = arith.constant 0 : index
    %c0_13 = arith.constant 0 : index
    %73 = vector.load %arg4[%c0_12, %c0_13] : memref<8x128xf32, #tpu.memory_space<vmem>>, vector<8x128xf32>
    tpu.vector_store %arg4[%c0_12, %c0_13], %72 {strides = array<i32>} : memref<8x128xf32, #tpu.memory_space<vmem>>, vector<8x128xf32>,
    return
  }
  func.func @transform_0(%arg0: i32, %arg1: memref<4xf32, #tpu.memory_space<smem>>) -> (i32, i32) {
    %c0_i32 = arith.constant 0 : i32
    %c0_i32_0 = arith.constant 0 : i32
    return %arg0, %c0_i32 : i32, i32
  }
  func.func @transform_1(%arg0: i32, %arg1: memref<4xf32, #tpu.memory_space<smem>>) -> (i32, i32) {
    %c0_i32 = arith.constant 0 : i32
    %c0_i32_0 = arith.constant 0 : i32
    return %arg0, %c0_i32 : i32, i32
  }
  func.func @transform_2(%arg0: i32, %arg1: memref<4xf32, #tpu.memory_space<smem>>) -> (i32, i32) {
    %c0_i32 = arith.constant 0 : i32
    %c0_i32_0 = arith.constant 0 : i32
    return %arg0, %c0_i32 : i32, i32
  }
}

</mosaic_0001>

<llo_original>
// kernel: tpu_custom_call.1
$region0: #{tpu_custom_call.1}
  #allocation0 [shape = 'u32[]', space=smem, size = 0x4, offset = 0x4, fixed_abs, tag = 'smem constant byte address 0x4 - core index']
  #allocation1 [shape = 'u32[144,128]{1,0:T(1,128)}', space=vmem, size = 0x12000, scoped, tag = 'internal scratch']
  #allocation2 [shape = 's32[1]{0}', space=sflag, size = 0x4, scoped, tag = 'scoped memory for tpu_custom_call.1']
  #allocation3 [shape = 'u8[512]{0}', space=smem, size = 0x200, scoped, tag = 'prefetched SMEM operand 0']
  %s0 = inlined_call_operand.hbm [shape: f32[4], index: 0, kind: input, shape index: {}]
  %s1 = inlined_call_operand.hbm [shape: f32[8,128], index: 1, kind: input, shape index: {}]
  %s2 = inlined_call_operand.hbm [shape: f32[8,128], index: 2, kind: input, shape index: {}]
  %s3 = inlined_call_operand.hbm [shape: f32[8,128], index: 3, kind: output, shape index: {}]
  %s4 = sld [smem:[#allocation0]]
  $region26: #{tpu_custom_call.1} parent=0
    _
  %s6 = ssub.s32 1, %s4
  %s7 = scalar_select 0, %s6, %s4
  %9 = dma.hbm_to_smem %s0, 16, [#allocation3], [#allocation2]
  %10 = dma.done [#allocation2], 16
  %11 = sfence
  $region1: #{tpu_custom_call.1} parent=0
    #allocation4 [shape = 'u8[4096]{0}', space=vmem, size = 0x1000, scoped, tag = 'input window, operand 1, single buffered']
    #allocation5 [shape = 's32[1]{0}', space=sflag, size = 0x4, scoped, tag = 'scoped memory for tpu_custom_call.1']
    #allocation6 [shape = 's32[1]{0}', space=sflag, size = 0x4, scoped, tag = 'scoped memory for tpu_custom_call.1']
    #allocation7 [shape = 'u8[4096]{0}', space=vmem, size = 0x1000, scoped, tag = 'input window, operand 2, single buffered']
    #allocation8 [shape = 's32[1]{0}', space=sflag, size = 0x4, scoped, tag = 'scoped memory for tpu_custom_call.1']
    #allocation9 [shape = 'u8[4096]{0}', space=vmem, size = 0x1000, scoped, tag = 'output window, operand 0, single buffered']
    %12 = vsyncpa [#allocation5], 0
    %13 = vsyncpa [#allocation8], 0
    %14 = vsyncpa [#allocation6], 0
    // Predicated region
    $region2: #{tpu_custom_call.1} parent=1 // pred_check
      _
    $region3: #{tpu_custom_call.1} parent=1 // pred_check_branch
      %16 = sbr.rel (0) target = $region5
    $region4: #{tpu_custom_call.1} parent=1 // pred_region
      %s18 = ssub.s32 128, 128
      %19 = vsyncadd [#allocation5], %s18
      %s21 = sshll.u32 [#allocation4], 4
      %s22 = int_to_ptr.vmem [resolvable:$true] %s21
      %24 = dma.hbm_to_vmem [thread:$0]  %s1, 128, %s22, [#allocation5]
    $region5: #{tpu_custom_call.1} parent=1 // pred_fallthru
      _
    // Predicated region
    $region6: #{tpu_custom_call.1} parent=1 // pred_check
      _
    $region7: #{tpu_custom_call.1} parent=1 // pred_check_branch
      %26 = sbr.rel (0) target = $region9
    $region8: #{tpu_custom_call.1} parent=1 // pred_region
      %s28 = ssub.s32 128, 128
      %29 = vsyncadd [#allocation8], %s28
      %s31 = sshll.u32 [#allocation7], 4
      %s32 = int_to_ptr.vmem [resolvable:$true] %s31
      %34 = dma.hbm_to_vmem [thread:$0]  %s2, 128, %s32, [#allocation8]
    $region9: #{tpu_custom_call.1} parent=1 // pred_fallthru
      _
    // Predicated region
    $region10: #{tpu_custom_call.1} parent=1 // pred_check
      _
    $region11: #{tpu_custom_call.1} parent=1 // pred_check_branch
      %36 = sbr.rel (0) target = $region13
    $region12: #{tpu_custom_call.1} parent=1 // pred_region
      %37 = dma.done [#allocation5], 128
    $region13: #{tpu_custom_call.1} parent=1 // pred_fallthru
      _
    // Predicated region
    $region14: #{tpu_custom_call.1} parent=1 // pred_check
      _
    $region15: #{tpu_custom_call.1} parent=1 // pred_check_branch
      %39 = sbr.rel (0) target = $region17
    $region16: #{tpu_custom_call.1} parent=1 // pred_region
      %40 = dma.done [#allocation8], 128
    $region17: #{tpu_custom_call.1} parent=1 // pred_fallthru
      _
    %v41 = vld [vmem:[#allocation4] sm:$0xff]
    %v42 = vld [vmem:[#allocation7] sm:$0xff]
    %s43 = sld [smem:[#allocation3]]
    %v44 = vstv %s43
    %v45 = vsub.f32 %v41, %v44
    %v46 = vmul.f32 %v45, %v45
    %s47 = sld [smem:[#allocation3 + $0x1]]
    %v48 = vstv %s47
    %v49 = vsub.f32 %v41, %v48
    %v50 = vmul.f32 %v49, %v49
    %v51 = vmin.f32 %v46, %v50
    %s52 = sld [smem:[#allocation3 + $0x2]]
    %v53 = vstv %s52
    %v54 = vsub.f32 %v41, %v53
    %v55 = vmul.f32 %v54, %v54
    %v56 = vmin.f32 %v51, %v55
    %s57 = sld [smem:[#allocation3 + $0x3]]
    %v58 = vstv %s57
    %v59 = vsub.f32 %v41, %v58
    %v60 = vmul.f32 %v59, %v59
    %v61 = vmin.f32 %v56, %v60
    %v62 = vsub.f32 %v46, %v61
    %v63 = vmul.f32 %v62, %v42
    %v64 = vmul.f32 %v63, 1.442695
    %v65 = vpow.pop %v64
    %v66 = vmul.f32 %v65, %v44
    %v67 = vsub.f32 %v50, %v61
    %v68 = vmul.f32 %v67, %v42
    %v69 = vmul.f32 %v68, 1.442695
    %v70 = vpow.pop %v69
    %v71 = vadd.f32 %v65, %v70
    %v72 = vmul.f32 %v70, %v48
    %v73 = vadd.f32 %v66, %v72
    %v74 = vsub.f32 %v55, %v61
    %v75 = vmul.f32 %v74, %v42
    %v76 = vmul.f32 %v75, 1.442695
    %v77 = vpow.pop %v76
    %v78 = vadd.f32 %v71, %v77
    %v79 = vmul.f32 %v77, %v53
    %v80 = vadd.f32 %v73, %v79
    %v81 = vsub.f32 %v60, %v61
    %v82 = vmul.f32 %v81, %v42
    %v83 = vmul.f32 %v82, 1.442695
    %v84 = vpow.pop %v83
    %v85 = vadd.f32 %v78, %v84
    %v86 = vmul.f32 %v84, %v58
    %v87 = vadd.f32 %v80, %v86
    %v88 = vrcp.pop %v85
    %v89 = vmul.f32 %v85, %v88
    %v90 = vsub.f32 2.0, %v89
    %v91 = vmul.f32 %v88, %v90
    %v92 = vmul.f32 %v87, %v91
    %93 = vst [vmem:[#allocation9] sm:$0xff] %v92
    // Predicated region
    $region18: #{tpu_custom_call.1} parent=1 // pred_check
      _
    $region19: #{tpu_custom_call.1} parent=1 // pred_check_branch
      %95 = sbr.rel (0) target = $region21
    $region20: #{tpu_custom_call.1} parent=1 // pred_region
      %s97 = ssub.s32 128, 128
      %98 = vsyncadd [#allocation6], %s97
      %s100 = sshll.u32 [#allocation9], 4
      %s101 = int_to_ptr.vmem [resolvable:$true] %s100
      %103 = dma.vmem_to_hbm [thread:$0]  %s101, 128, %s3, [#allocation6]
    $region21: #{tpu_custom_call.1} parent=1 // pred_fallthru
      _
    // Predicated region
    $region22: #{tpu_custom_call.1} parent=1 // pred_check
      _
    $region23: #{tpu_custom_call.1} parent=1 // pred_check_branch
      %105 = sbr.rel (0) target = $region25
    $region24: #{tpu_custom_call.1} parent=1 // pred_region
      %106 = dma.done [#allocation6], 128
    $region25: #{tpu_custom_call.1} parent=1 // pred_fallthru
      _
    %107 = vsyncpa [#allocation5], 1
    %108 = vsyncpa [#allocation8], 1
    %109 = vsyncpa [#allocation6], 1

</llo_original>
